<compile_context>
chip_gen: v7x
topology: tpu7x:2x2x1
jax: 0.10.0
libtpu: 0.0.40
codegen_flags: <defaults>
</compile_context>

<pallas_src>
from typing import Dict, List

import jax
import jax.numpy as jnp
from jax.experimental import pallas as pl
from jax.experimental.pallas import tpu as pltpu


LANE = 128          # output-feature axis padded to the TPU lane width
BATCH_TILE = 1024   # rows per grid step in the batch-tiled path (v7x-VMEM safe)


# ----------------------------- Pallas kernel ------------------------------ #

def _linear_kernel(x_ref, w_ref, b_ref, o_ref):
    # x_ref: [TB, IN] f32, w_ref: [IN, OUT_PAD] bf16, b_ref: [1, OUT_PAD] f32,
    # o_ref: [TB, OUT_PAD] f32.
    x = x_ref[...].astype(jnp.bfloat16)                       # bf16 MXU operands
    acc = jnp.dot(x, w_ref[...], preferred_element_type=jnp.float32)
    o_ref[...] = acc + b_ref[...]                             # f32 epilogue (v5e-safe)


def linear_pallas(x: jax.Array, w_t_pad: jax.Array, b_pad: jax.Array,
                  out_features: int) -> jax.Array:
    """y = x @ W.T + b, matching torch.nn.Linear semantics.

    x:        [B, IN]       float32
    w_t_pad:  [IN, OUT_PAD] bfloat16  (pre-transposed, lane-padded weight)
    b_pad:    [1, OUT_PAD]  float32   (lane-padded bias)
    returns:  [B, out_features] float32
    """
    B, IN = x.shape
    OUT_PAD = w_t_pad.shape[1]

    if B <= BATCH_TILE or B % BATCH_TILE != 0:
        # Small / irregular batch: single whole-array VMEM call, no grid.
        y_pad = pl.pallas_call(
            _linear_kernel,
            out_shape=jax.ShapeDtypeStruct((B, OUT_PAD), jnp.float32),
            in_specs=[pl.BlockSpec(memory_space=pltpu.MemorySpace.VMEM)] * 3,
            out_specs=pl.BlockSpec(memory_space=pltpu.MemorySpace.VMEM),
        )(x, w_t_pad, b_pad)
    else:
        # Large batch: tile the batch axis so x/out DMA double-buffers against
        # the matmul; "parallel" shards the grid across v7x's 2 TensorCores.
        tb = BATCH_TILE
        y_pad = pl.pallas_call(
            _linear_kernel,
            out_shape=jax.ShapeDtypeStruct((B, OUT_PAD), jnp.float32),
            grid_spec=pl.GridSpec(
                grid=(B // tb,),
                in_specs=[
                    pl.BlockSpec((tb, IN), lambda i: (i, 0)),
                    pl.BlockSpec((IN, OUT_PAD), lambda i: (0, 0)),
                    pl.BlockSpec((1, OUT_PAD), lambda i: (0, 0)),
                ],
                out_specs=pl.BlockSpec((tb, OUT_PAD), lambda i: (i, 0)),
            ),
            compiler_params=pltpu.CompilerParams(
                dimension_semantics=("parallel",)),
        )(x, w_t_pad, b_pad)

    return y_pad[:, :out_features]


# --------------------------- NamedModule wrapper --------------------------- #

class LinearModule:
    """Inner module: deterministic Linear(IN, OUT) whose forward runs in Pallas."""

    def __init__(self, in_features: int, out_features: int):
        kw, kb = jax.random.split(jax.random.PRNGKey(42))
        bound = 1.0 / (in_features ** 0.5)
        self.in_features = in_features
        self.out_features = out_features
        # Canonical PyTorch-layout parameters (kept for reference checks).
        self.weight = jax.random.uniform(
            kw, (out_features, in_features), jnp.float32, -bound, bound)
        self.bias = jax.random.uniform(
            kb, (out_features,), jnp.float32, -bound, bound)
        # Kernel-layout parameters, prepared ONCE at init:
        #   transpose -> [IN, OUT], pad lanes to 128, cast weight to bf16.
        out_pad = ((out_features + LANE - 1) // LANE) * LANE
        w_t = jnp.zeros((in_features, out_pad), jnp.float32)
        w_t = w_t.at[:, :out_features].set(self.weight.T)
        self.w_t_pad = w_t.astype(jnp.bfloat16)
        self.b_pad = (jnp.zeros((1, out_pad), jnp.float32)
                      .at[0, :out_features].set(self.bias))

    def __call__(self, x: jax.Array) -> jax.Array:
        return linear_pallas(x, self.w_t_pad, self.b_pad, self.out_features)


class NamedModule:
    """JAX port of framework.module.NamedModule (dict-in / dict-out routing)."""

    def __init__(self, module, from_names: List[str], to_names: List[str]):
        self.module = module
        self.from_names = from_names
        self.to_names = to_names

    def forward(self, name2tensor: Dict[str, jax.Array]) -> Dict[str, jax.Array]:
        assert name2tensor.keys() == set(self.from_names)
        inputs = [name2tensor[name] for name in self.from_names]
        res = self.module(*inputs)
        if isinstance(res, jax.Array):
            res = [res]
        return dict(zip(self.to_names, res))

    def __call__(self, name2tensor: Dict[str, jax.Array]) -> Dict[str, jax.Array]:
        return self.forward(name2tensor)


# ---------------------------------- main ----------------------------------- #

if __name__ == "__main__":
    B, IN, OUT = 8, 32, 32

    inner = LinearModule(IN, OUT)
    named = NamedModule(inner, from_names=["x"], to_names=["y"])

    x = jax.random.normal(jax.random.PRNGKey(0), (B, IN), dtype=jnp.float32)
    out = named({"x": x})
    y = out["y"]
    jax.block_until_ready(y)
    assert y.shape == (B, OUT)

    # Reference 1: exact kernel semantics (bf16-rounded operands, f32
    # accumulation + f32 bias) — tight tolerance.
    xb = x.astype(jnp.bfloat16).astype(jnp.float32)
    wb = inner.weight.astype(jnp.bfloat16).astype(jnp.float32)
    y_bf16_ref = xb @ wb.T + inner.bias
    assert jnp.allclose(y, y_bf16_ref, atol=1e-4, rtol=1e-4)

    # Reference 2: plain f32 nn.Linear semantics — tolerance covers bf16
    # rounding of the matmul inputs.
    y_f32_ref = x @ inner.weight.T + inner.bias
    assert jnp.allclose(y, y_f32_ref, atol=5e-2, rtol=5e-2)

    # Also exercise the batch-tiled ("parallel") path once.
    B_big = 4 * BATCH_TILE
    x_big = jax.random.normal(jax.random.PRNGKey(1), (B_big, IN), dtype=jnp.float32)
    y_big = named({"x": x_big})["y"]
    jax.block_until_ready(y_big)
    assert y_big.shape == (B_big, OUT)
    y_big_ref = (x_big.astype(jnp.bfloat16).astype(jnp.float32) @ wb.T) + inner.bias
    assert jnp.allclose(y_big, y_big_ref, atol=1e-4, rtol=1e-4)

    print("KERNEL_OK")
</pallas_src>

<mosaic_0001>
module attributes {stable_mosaic.version = 11 : i64} {
  func.func @_linear_kernel(%arg0: memref<8x32xf32, #tpu.memory_space<vmem>>, %arg1: memref<32x128xbf16, #tpu.memory_space<vmem>>, %arg2: memref<1x128xf32, #tpu.memory_space<vmem>>, %arg3: memref<8x128xf32, #tpu.memory_space<vmem>>) attributes {dimension_semantics = [], scalar_prefetch = 0 : i64, scratch_operands = 0 : i64, tpu.core_type = #tpu.core_type<tc>} {
    %c0 = arith.constant 0 : index
    %c0_0 = arith.constant 0 : index
    %0 = vector.load %arg0[%c0, %c0_0] : memref<8x32xf32, #tpu.memory_space<vmem>>, vector<8x32xf32>
    %1 = arith.truncf %0 : vector<8x32xf32> to vector<8x32xbf16>
    %c0_1 = arith.constant 0 : index
    %c0_2 = arith.constant 0 : index
    %2 = vector.load %arg1[%c0_1, %c0_2] : memref<32x128xbf16, #tpu.memory_space<vmem>>, vector<32x128xbf16>
    %cst = arith.constant dense<0.000000e+00> : vector<8x128xf32>
    %3 = tpu.matmul %1, %2, %cst {dimension_numbers = #tpu.dot_dimension_numbers<[1], [0], [0], [1], [0, 0, 1, 1], [], []>} : vector<8x32xbf16>, vector<32x128xbf16>, vector<8x128xf32> -> vector<8x128xf32>
    %c0_3 = arith.constant 0 : index
    %c0_4 = arith.constant 0 : index
    %4 = vector.load %arg2[%c0_3, %c0_4] : memref<1x128xf32, #tpu.memory_space<vmem>>, vector<1x128xf32>
    %5 = vector.broadcast %4 : vector<1x128xf32> to vector<8x128xf32>
    %6 = arith.addf %3, %5 : vector<8x128xf32>
    %c0_5 = arith.constant 0 : index
    %c0_6 = arith.constant 0 : index
    %7 = vector.load %arg3[%c0_5, %c0_6] : memref<8x128xf32, #tpu.memory_space<vmem>>, vector<8x128xf32>
    tpu.vector_store %arg3[%c0_5, %c0_6], %6 {strides = array<i32>} : memref<8x128xf32, #tpu.memory_space<vmem>>, vector<8x128xf32>,
    return
  }
}

</mosaic_0001>

<llo_original>
// kernel: tpu_custom_call.1
$region0: #{tpu_custom_call.1}
  #allocation0 [shape = 'u32[]', space=smem, size = 0x4, offset = 0x4, fixed_abs, tag = 'smem constant byte address 0x4 - core index']
  #allocation1 [shape = 'u32[144,128]{1,0:T(1,128)}', space=vmem, size = 0x12000, scoped, tag = 'internal scratch']
  %s0 = inlined_call_operand.hbm [shape: f32[8,32], index: 0, kind: input, shape index: {}]
  %s1 = inlined_call_operand.hbm [shape: bf16[32,128], index: 1, kind: input, shape index: {}]
  %s2 = inlined_call_operand.vmem [shape: f32[1,128], index: 2, kind: input, shape index: {}]
  %s3 = inlined_call_operand.hbm [shape: f32[8,128], index: 3, kind: output, shape index: {}]
  %s4 = sld [smem:[#allocation0]]
  $region30: #{tpu_custom_call.1} parent=0
    _
  %s6 = ssub.s32 1, %s4
  %s7 = scalar_select 0, %s6, %s4
  $region1: #{tpu_custom_call.1} parent=0
    #allocation2 [shape = 'u8[4096]{0}', space=vmem, size = 0x1000, scoped, tag = 'input window, operand 0, single buffered']
    #allocation3 [shape = 's32[1]{0}', space=sflag, size = 0x4, scoped, tag = 'scoped memory for tpu_custom_call.1']
    #allocation4 [shape = 's32[1]{0}', space=sflag, size = 0x4, scoped, tag = 'scoped memory for tpu_custom_call.1']
    #allocation5 [shape = 'u8[8192]{0}', space=vmem, size = 0x2000, scoped, tag = 'input window, operand 1, single buffered']
    #allocation6 [shape = 's32[1]{0}', space=sflag, size = 0x4, scoped, tag = 'scoped memory for tpu_custom_call.1']
    #allocation7 [shape = 'u8[4096]{0}', space=vmem, size = 0x1000, scoped, tag = 'output window, operand 0, single buffered']
    %8 = vsyncpa [#allocation3], 0
    %9 = vsyncpa [#allocation6], 0
    %10 = vsyncpa [#allocation4], 0
    // Predicated region
    $region2: #{tpu_custom_call.1} parent=1 // pred_check
      _
    $region3: #{tpu_custom_call.1} parent=1 // pred_check_branch
      %12 = sbr.rel (0) target = $region5
    $region4: #{tpu_custom_call.1} parent=1 // pred_region
      %s14 = ssub.s32 128, 128
      %15 = vsyncadd [#allocation3], %s14
      %s17 = sshll.u32 [#allocation2], 4
      %s18 = int_to_ptr.vmem [resolvable:$true] %s17
      %20 = dma.hbm_to_vmem [thread:$0]  %s0, 128, %s18, [#allocation3]
    $region5: #{tpu_custom_call.1} parent=1 // pred_fallthru
      _
    // Predicated region
    $region6: #{tpu_custom_call.1} parent=1 // pred_check
      _
    $region7: #{tpu_custom_call.1} parent=1 // pred_check_branch
      %22 = sbr.rel (0) target = $region9
    $region8: #{tpu_custom_call.1} parent=1 // pred_region
      %s24 = ssub.s32 256, 256
      %25 = vsyncadd [#allocation6], %s24
      %s26 = sshll.u32 [#allocation5], 4
      %s27 = int_to_ptr.vmem [resolvable:$true] %s26
      %32 = dma.hbm_to_vmem [thread:$0]  %s1, 256, %s27, [#allocation6], 64, 64, 4
    $region9: #{tpu_custom_call.1} parent=1 // pred_fallthru
      _
    // Predicated region
    $region10: #{tpu_custom_call.1} parent=1 // pred_check
      _
    $region11: #{tpu_custom_call.1} parent=1 // pred_check_branch
      %34 = sbr.rel (0) target = $region13
    $region12: #{tpu_custom_call.1} parent=1 // pred_region
      _
    $region13: #{tpu_custom_call.1} parent=1 // pred_fallthru
      _
    // Predicated region
    $region14: #{tpu_custom_call.1} parent=1 // pred_check
      _
    $region15: #{tpu_custom_call.1} parent=1 // pred_check_branch
      %36 = sbr.rel (0) target = $region17
    $region16: #{tpu_custom_call.1} parent=1 // pred_region
      %37 = dma.done [#allocation3], 128
    $region17: #{tpu_custom_call.1} parent=1 // pred_fallthru
      _
    // Predicated region
    $region18: #{tpu_custom_call.1} parent=1 // pred_check
      _
    $region19: #{tpu_custom_call.1} parent=1 // pred_check_branch
      %39 = sbr.rel (0) target = $region21
    $region20: #{tpu_custom_call.1} parent=1 // pred_region
      %40 = dma.done [#allocation6], 256
    $region21: #{tpu_custom_call.1} parent=1 // pred_fallthru
      _
    %v42 = vld [vmem:[#allocation2] sm:$0xff]
    %v43 = vpack.c.bf16 %v42, %v42
    %v44 = vld [vmem:[#allocation5] sm:$0xf]
    %v45 = vld [vmem:[#allocation5 + $0x4] sm:$0xf]
    %v46 = vld [vmem:[#allocation5 + $0x8] sm:$0xf]
    %v47 = vld [vmem:[#allocation5 + $0xc] sm:$0xf]
    %v48 = vld [vmem:[%s2] sm:$0x1]
    %v50 = vlaneseq
    %v51 = vshrl.u32 %v50, 7
    %v52 = vsub.s32 0, %v51
    %v53 = vrot.slane %v48, %v52
    %v59 = vunpack.c.l.b16 %v44
    %v60 = vunpack.c.l.b16 %v45
    %v61 = vunpack.c.l.b16 %v46
    %v62 = vunpack.c.l.b16 %v47
    %v63 = vpack.c.b16 %v60, %v59
    %v64 = vpack.c.b16 %v62, %v61
    %vm67 = vcmask 261120
    %v69 = vsel %vm67, %v43, 0
    %71 = vmatprep.subr.bf16.mxu0 0
    %72 = vmatpush1.bf16.msra.mxu0 %v63
    %73 = vmatprep.subr.bf16.mxu0 0
    %74 = vmatpush1.bf16.msra.mxu0 %v64
    %75 = vmatprep.subr.bf16.mxu0 0
    %76 = vmatpush1.bf16.msra.mxu0 0
    %77 = vmatprep.subr.bf16.mxu0 0
    %78 = vmatpush1.bf16.msra.mxu0 0
    %79 = vmatprep.subr.bf16.mxu0 0
    %80 = vmatpush1.bf16.msra.mxu0 0
    %81 = vmatprep.subr.bf16.mxu0 0
    %82 = vmatpush1.bf16.msra.mxu0 0
    %83 = vmatprep.subr.bf16.mxu0 0
    %84 = vmatpush1.bf16.msra.mxu0 0
    %85 = vmatprep.subr.bf16.mxu0 0
    %86 = vmatpush1.bf16.msra.mxu0 0
    %87 = vmatprep.subr.bf16.mxu0 0
    %88 = vmatpush1.bf16.msra.mxu0 0
    %89 = vmatprep.subr.bf16.mxu0 0
    %90 = vmatpush1.bf16.msra.mxu0 0
    %91 = vmatprep.subr.bf16.mxu0 0
    %92 = vmatpush1.bf16.msra.mxu0 0
    %93 = vmatprep.subr.bf16.mxu0 0
    %94 = vmatpush1.bf16.msra.mxu0 0
    %95 = vmatprep.subr.bf16.mxu0 0
    %96 = vmatpush1.bf16.msra.mxu0 0
    %97 = vmatprep.subr.bf16.mxu0 0
    %98 = vmatpush1.bf16.msra.mxu0 0
    %99 = vmatprep.subr.bf16.mxu0 0
    %100 = vmatpush1.bf16.msra.mxu0 0
    %101 = vmatprep.subr.bf16.mxu0 0
    %102 = vmatpush1.bf16.msra.mxu0 0
    %103 = vmatprep.mubr.bf16.mxu0 0
    %104 = vmatmul.mubr.bf16.gmra.mrb[0].mxu0 %v69
    %v105 = vpop.f32.mrb[0].mxu0
    %v106 = vadd.f32 %v53, %v105
    %v107 = vpop.f32.mrb[0].mxu0
    %v108 = vpop.f32.mrb[0].mxu0
    %v109 = vpop.f32.mrb[0].mxu0
    %110 = vdwg.mxu0
    %111 = vst [vmem:[#allocation7] sm:$0xff] %v106
    // Predicated region
    $region22: #{tpu_custom_call.1} parent=1 // pred_check
      _
    $region23: #{tpu_custom_call.1} parent=1 // pred_check_branch
      %113 = sbr.rel (0) target = $region25
    $region24: #{tpu_custom_call.1} parent=1 // pred_region
      %s115 = ssub.s32 128, 128
      %116 = vsyncadd [#allocation4], %s115
      %s118 = sshll.u32 [#allocation7], 4
      %s119 = int_to_ptr.vmem [resolvable:$true] %s118
      %121 = dma.vmem_to_hbm [thread:$0]  %s119, 128, %s3, [#allocation4]
    $region25: #{tpu_custom_call.1} parent=1 // pred_fallthru
      _
    // Predicated region
    $region26: #{tpu_custom_call.1} parent=1 // pred_check
      _
    $region27: #{tpu_custom_call.1} parent=1 // pred_check_branch
      %123 = sbr.rel (0) target = $region29
    $region28: #{tpu_custom_call.1} parent=1 // pred_region
      %124 = dma.done [#allocation4], 128
    $region29: #{tpu_custom_call.1} parent=1 // pred_fallthru
      _
    %125 = vsyncpa [#allocation3], 1
    %126 = vsyncpa [#allocation6], 1
    %127 = vsyncpa [#allocation4], 1

</llo_original>
